<compile_context>
chip_gen: v7x
topology: tpu7x:2x2x1
jax: 0.10.0
libtpu: 0.0.40
codegen_flags: <defaults>
</compile_context>

<pallas_src>
import numpy as np
import jax
import jax.numpy as jnp
from jax.experimental import pallas as pl
from jax.experimental.pallas import tpu as pltpu

# Safe everywhere: v5e/v6e have 128 MiB physical VMEM, v7x only 64 MiB.
# Working sets here are tiny (<1 MiB double-buffered), so 32 MiB leaves
# generous headroom on all generations.
VMEM_LIMIT_BYTES = 32 * 1024 * 1024


# ---------------------------------------------------------------------------
# (1) region info: plain JAX (fused into the XLA feed; no separate kernel)
# ---------------------------------------------------------------------------
def make_region_info(pred_boxes):
    # pred_boxes: [B, N, 4] = [x1, y1, x2, y2]
    height = pred_boxes[..., 3:4] - pred_boxes[..., 1:2]
    width = pred_boxes[..., 2:3] - pred_boxes[..., 0:1]
    return jnp.concatenate([pred_boxes, height, width], axis=-1)  # [B, N, 6]


# ---------------------------------------------------------------------------
# (2)+(3a) backbone (1x1x1 conv + ReLU) fused with token-mean pooling
# ---------------------------------------------------------------------------
def backbone_ctx_forward(clips, w_bb, b_bb, *, hw_tile=2048):
    """Returns the per-batch context vector [B, Cf] = mean over tokens of
    ReLU(conv1x1x1(clips)).  The full feature tensor is never written to HBM.
    """
    B, C, T, Hs, Ws = clips.shape
    HW = Hs * Ws
    n_tok = T * HW
    Cf = w_bb.shape[0]

    # Free reshape (merges adjacent contiguous dims, no transpose is
    # materialized): channels*time ride the sublane axis (C*T >= 8 avoids the
    # 4->8 sublane padding a (1, C, tok) block would pay on the dominant clips
    # stream); H*W stays lane-dense.
    x = clips.reshape(B, C * T, HW)

    hw_tile = min(hw_tile, HW)
    if hw_tile < HW:
        hw_tile = max(128, (hw_tile // 128) * 128)   # lane-aligned tiles
    n_hw = -(-HW // hw_tile)                         # cdiv; last tile masked
    inv_n_tok = 1.0 / float(n_tok)

    def kernel(w_ref, b_ref, x_ref, ctx_ref, acc_ref):
        # Reduction over hw tiles. NOTE: correct only because the hw axis is
        # the innermost ("arbitrary") grid axis, so acc_ref resets at j == 0
        # for every b. Do not reorder grid axes or mark hw "parallel".
        j = pl.program_id(1)

        @pl.when(j == 0)
        def _init():
            acc_ref[...] = jnp.zeros_like(acc_ref)

        xt = x_ref[0]                                       # [C*T, hw_tile] f32
        w = w_ref[...]                                      # [Cf, C]
        bias0 = jnp.broadcast_to(b_ref[...], (Cf, hw_tile))  # hoisted once

        # Lane-validity mask for a (possibly) partial last hw tile.
        lane = jax.lax.broadcasted_iota(jnp.int32, (1, hw_tile), 1)
        valid = lane < (HW - j * hw_tile)

        partial = jnp.zeros((Cf, 1), jnp.float32)
        # Tiny stem K (C=4): f32 VPU broadcast-MAC outer products instead of a
        # degenerate-K MXU matmul (K would pad to 128/256).  f32 accumulate is
        # also the right choice on v5e (no bf16 VPU path).
        # TODO(synk): the real config-defined Backbone replaces this loop.
        for t in range(T):
            feat_t = bias0
            for c in range(C):
                feat_t = feat_t + w[:, c:c + 1] * xt[c * T + t:c * T + t + 1, :]
            feat_t = jnp.maximum(feat_t, 0.0)               # fused ReLU
            feat_t = jnp.where(valid, feat_t, 0.0)          # drop OOB lanes
            partial = partial + jnp.sum(feat_t, axis=1, keepdims=True)
        acc_ref[...] += partial

        @pl.when(j == n_hw - 1)
        def _finalize():
            ctx_ref[0] = acc_ref[...] * inv_n_tok           # token mean (f32)

    ctx = pl.pallas_call(
        kernel,
        out_shape=jax.ShapeDtypeStruct((B, Cf, 1), jnp.float32),
        grid_spec=pltpu.PrefetchScalarGridSpec(
            num_scalar_prefetch=0,
            # b is "parallel" (covers both v7x TensorCores when B >= 2); the
            # hw reduction axis is innermost and "arbitrary".
            grid=(B, n_hw),
            in_specs=[
                pl.BlockSpec((Cf, C), lambda b, j: (0, 0)),
                pl.BlockSpec((Cf, 1), lambda b, j: (0, 0)),
                pl.BlockSpec((1, C * T, hw_tile), lambda b, j: (b, 0, j)),
            ],
            out_specs=pl.BlockSpec((1, Cf, 1), lambda b, j: (b, 0, 0)),
            scratch_shapes=[pltpu.VMEM((Cf, 1), jnp.float32)],
        ),
        compiler_params=pltpu.CompilerParams(
            dimension_semantics=("parallel", "arbitrary"),
            vmem_limit_bytes=VMEM_LIMIT_BYTES,
        ),
    )(w_bb, b_bb, x)
    return ctx[:, :, 0]   # [B, Cf]


# ---------------------------------------------------------------------------
# (3b) head finalize: single fused matmul over flattened B*Nbox rows
# ---------------------------------------------------------------------------
def head_forward(ctx, roi_features, region_info, boxes_mask, hp, num_classes):
    B, nbox, dr = roi_features.shape
    Cf = ctx.shape[1]
    wc, wr, wg, b1, wcls, bcls = (hp["wc"], hp["wr"], hp["wg"],
                                  hp["b1"], hp["wcls"], hp["bcls"])
    hh = wr.shape[1]
    ncls_pad = wcls.shape[1]

    # Fuse the three lane-sparse streams (roi Dr, region 6, ctx Cf) into one
    # operand + one weight -> a single MXU matmul with M = B*Nbox rows
    # (better MXU occupancy than per-batch M = Nbox, no K=6 degenerate dot,
    # no XLU broadcast/reduce path for the ctx term). Tiny wrapper-side
    # concat/broadcast (<10 KB), no extra HBM round-trips of note.
    ctx_b = jnp.broadcast_to(ctx[:, None, :], (B, nbox, Cf))
    fused_in = jnp.concatenate([roi_features, region_info, ctx_b], axis=-1)
    fused_in = fused_in.reshape(B * nbox, dr + 6 + Cf)
    w_fused = jnp.concatenate([wr, wg, wc], axis=0)          # [Dr+6+Cf, Hh]
    mask_col = boxes_mask.astype(jnp.float32).reshape(B * nbox, 1)

    M, Df = fused_in.shape

    def kernel(xin_ref, wf_ref, b1_ref, wcls_ref, bcls_ref, m_ref, out_ref):
        h = jnp.dot(xin_ref[...], wf_ref[...],
                    preferred_element_type=jnp.float32) + b1_ref[...]
        h = jnp.maximum(h, 0.0)
        logits = jnp.dot(h, wcls_ref[...],
                         preferred_element_type=jnp.float32) + bcls_ref[...]
        # TODO(synk): confirm pred_boxes_mask semantics vs the PyTorch
        # Head/criterion (zeroing masked-box logits chosen here).
        out_ref[...] = logits * m_ref[...]                   # mask fused

    logits = pl.pallas_call(
        kernel,
        out_shape=jax.ShapeDtypeStruct((M, ncls_pad), jnp.float32),
        grid_spec=pltpu.PrefetchScalarGridSpec(
            num_scalar_prefetch=0,
            grid=(1,),
            in_specs=[
                pl.BlockSpec((M, Df), lambda i: (0, 0)),
                pl.BlockSpec((Df, hh), lambda i: (0, 0)),
                pl.BlockSpec((1, hh), lambda i: (0, 0)),
                pl.BlockSpec((hh, ncls_pad), lambda i: (0, 0)),
                pl.BlockSpec((1, ncls_pad), lambda i: (0, 0)),
                pl.BlockSpec((M, 1), lambda i: (0, 0)),
            ],
            out_specs=pl.BlockSpec((M, ncls_pad), lambda i: (0, 0)),
        ),
        compiler_params=pltpu.CompilerParams(
            dimension_semantics=("arbitrary",),
            vmem_limit_bytes=VMEM_LIMIT_BYTES,
        ),
    )(fused_in, w_fused, b1, wcls, bcls, mask_col)

    # strip the lane padding of num_classes in the wrapper (lane-dense vst
    # inside the kernel, slice outside)
    return logits.reshape(B, nbox, ncls_pad)[:, :, :num_classes]


# ---------------------------------------------------------------------------
# JARViS.forward
# ---------------------------------------------------------------------------
def jarvis_forward(data, params, num_classes):
    region_info = make_region_info(data["pred_boxes"])
    # Backbone + token-mean pooling fused: the [B, Cf, n_tok] feature tensor
    # never hits HBM.
    ctx = backbone_ctx_forward(data["clips"], params["w_bb"], params["b_bb"])
    pred_logits = head_forward(ctx, data["roi_features"], region_info,
                               data["pred_boxes_mask"], params["head"],
                               num_classes)
    outputs = {
        "pred_logits": pred_logits,
        "pred_scores": data["pred_scores"],
        "pred_boxes_mask": data["pred_boxes_mask"],
        "pred_boxes": data["pred_boxes"],
    }
    # TODO(synk): 'criterion' and 'postprocessor' entries of the PyTorch return
    # dict are module references (loss / eval helpers), not tensor compute.
    # TODO(synk): sizes_before_padding cropping inside the real Head is not
    # modelled (features are pooled over all tokens).
    return {"outputs": outputs}


# ---------------------------------------------------------------------------
# Pure-JAX reference (all f32, matches the fused kernels) for a sanity check.
# ---------------------------------------------------------------------------
def reference_ctx(clips, w_bb, b_bb):
    B, C, T, Hs, Ws = clips.shape
    x = clips.reshape(B, C, -1)
    feat = jnp.maximum(jnp.einsum("fc,bct->bft", w_bb, x) + b_bb[None], 0.0)
    return feat.mean(axis=2)                                  # [B, Cf]


def reference_forward(data, params, num_classes):
    hp = params["head"]
    ctx = reference_ctx(data["clips"], params["w_bb"], params["b_bb"])
    region_info = make_region_info(data["pred_boxes"])
    h = (jnp.einsum("bnd,dh->bnh", data["roi_features"], hp["wr"])
         + jnp.einsum("bnd,dh->bnh", region_info, hp["wg"])
         + jnp.einsum("bc,ch->bh", ctx, hp["wc"])[:, None, :]
         + hp["b1"][None])
    h = jnp.maximum(h, 0.0)
    logits = jnp.einsum("bnh,hk->bnk", h, hp["wcls"]) + hp["bcls"][None]
    logits = logits * data["pred_boxes_mask"].astype(jnp.float32)[..., None]
    return logits[:, :, :num_classes]


if __name__ == "__main__":
    key = jax.random.PRNGKey(0)
    B, C, T, Hs, Ws = 2, 4, 4, 16, 16          # clips: [B, C, T, H, W]
    Cf, Nbox, Dr, Hh = 32, 8, 32, 128
    num_classes = 80
    ncls_pad = 128                             # lane-dense logits, sliced later

    ks = jax.random.split(key, 16)
    clips = jax.random.normal(ks[0], (B, C, T, Hs, Ws), jnp.float32)
    box_xy = jax.random.uniform(ks[1], (B, Nbox, 2), jnp.float32, 0.0, 0.5)
    box_wh = jax.random.uniform(ks[2], (B, Nbox, 2), jnp.float32, 0.1, 0.5)
    pred_boxes = jnp.concatenate([box_xy, box_xy + box_wh], axis=-1)
    roi_features = jax.random.normal(ks[3], (B, Nbox, Dr), jnp.float32)
    pred_scores = jax.random.uniform(ks[4], (B, Nbox), jnp.float32)
    pred_boxes_mask = jax.random.uniform(ks[5], (B, Nbox)) > 0.3
    sizes_before_padding = jnp.ones((B, 2), jnp.float32)

    params = {
        "w_bb": jax.random.normal(ks[6], (Cf, C), jnp.float32) * 0.1,
        "b_bb": jax.random.normal(ks[7], (Cf, 1), jnp.float32) * 0.01,
        "head": {
            "wc": jax.random.normal(ks[8], (Cf, Hh), jnp.float32) * 0.1,
            "wr": jax.random.normal(ks[9], (Dr, Hh), jnp.float32) * 0.1,
            "wg": jax.random.normal(ks[10], (6, Hh), jnp.float32) * 0.1,
            "b1": jax.random.normal(ks[11], (1, Hh), jnp.float32) * 0.01,
            "wcls": jax.random.normal(ks[12], (Hh, ncls_pad), jnp.float32) * 0.1,
            "bcls": jax.random.normal(ks[13], (1, ncls_pad), jnp.float32) * 0.01,
        },
    }

    data = {
        "clips": clips,
        "pred_boxes": pred_boxes,
        "roi_features": roi_features,
        "pred_scores": pred_scores,
        "pred_boxes_mask": pred_boxes_mask,
        "sizes_before_padding": sizes_before_padding,  # TODO(synk): unused in modelled head
    }

    # full forward vs pure-JAX reference (f32 end-to-end now -> tight tol)
    result = jarvis_forward(data, params, num_classes)
    logits = jax.block_until_ready(result["outputs"]["pred_logits"])
    ref = jax.block_until_ready(reference_forward(data, params, num_classes))
    np.testing.assert_allclose(np.asarray(logits), np.asarray(ref),
                               rtol=1e-3, atol=1e-3)

    # robustness check: H*W not a multiple of 128 + forced small hw tile
    # (exercises the cdiv grid + in-kernel lane masking path)
    clips2 = jax.random.normal(ks[14], (B, C, T, 16, 12), jnp.float32)
    ctx2 = jax.block_until_ready(
        backbone_ctx_forward(clips2, params["w_bb"], params["b_bb"], hw_tile=128))
    ctx2_ref = jax.block_until_ready(
        reference_ctx(clips2, params["w_bb"], params["b_bb"]))
    np.testing.assert_allclose(np.asarray(ctx2), np.asarray(ctx2_ref),
                               rtol=1e-3, atol=1e-3)

    print("KERNEL_OK")
</pallas_src>

<mosaic_0001>
module attributes {stable_mosaic.version = 11 : i64} {
  func.func @kernel(%arg0: i32, %arg1: i32, %arg2: memref<32x4xf32, #tpu.memory_space<vmem>>, %arg3: memref<32x1xf32, #tpu.memory_space<vmem>>, %arg4: memref<1x16x256xf32, #tpu.memory_space<vmem>>, %arg5: memref<1x32x1xf32, #tpu.memory_space<vmem>>, %arg6: memref<32x1xf32, #tpu.memory_space<vmem>>) attributes {dimension_semantics = [#tpu.dimension_semantics<parallel>, #tpu.dimension_semantics<arbitrary>], iteration_bounds = array<i64: 2, 1>, scalar_prefetch = 0 : i64, scratch_operands = 1 : i64, tpu.core_type = #tpu.core_type<tc>, window_params = [{pipeline_mode = #tpu.pipeline_mode<synchronous>, transform_indices = @transform_0, window_bounds = array<i64: 32, 4>}, {pipeline_mode = #tpu.pipeline_mode<synchronous>, transform_indices = @transform_1, window_bounds = array<i64: 32, 1>}, {transform_indices = @transform_2, window_bounds = array<i64: 1, 16, 256>}, {transform_indices = @transform_3, window_bounds = array<i64: 1, 32, 1>}]} {
    %c0_i32 = arith.constant 0 : i32
    %0 = arith.cmpi eq, %arg1, %c0_i32 : i32
    %1 = arith.extui %0 : i1 to i32
    %c0_i32_0 = arith.constant 0 : i32
    %2 = arith.cmpi ne, %1, %c0_i32_0 : i32
    scf.if %2 {
      %cst_26 = arith.constant 0.000000e+00 : f32
      %153 = vector.broadcast %cst_26 : f32 to vector<32x1xf32>
      %c0_27 = arith.constant 0 : index
      %c0_28 = arith.constant 0 : index
      %154 = vector.load %arg6[%c0_27, %c0_28] : memref<32x1xf32, #tpu.memory_space<vmem>>, vector<32x1xf32>
      tpu.vector_store %arg6[%c0_27, %c0_28], %153 {strides = array<i32>} : memref<32x1xf32, #tpu.memory_space<vmem>>, vector<32x1xf32>,
    } else {
    }
    %c0 = arith.constant 0 : index
    %c0_1 = arith.constant 0 : index
    %c0_2 = arith.constant 0 : index
    %3 = vector.load %arg4[%c0, %c0_1, %c0_2] : memref<1x16x256xf32, #tpu.memory_space<vmem>>, vector<1x16x256xf32>
    %4 = vector.shape_cast %3 : vector<1x16x256xf32> to vector<16x256xf32>
    %c0_3 = arith.constant 0 : index
    %c0_4 = arith.constant 0 : index
    %5 = vector.load %arg2[%c0_3, %c0_4] : memref<32x4xf32, #tpu.memory_space<vmem>>, vector<32x4xf32>
    %c0_5 = arith.constant 0 : index
    %c0_6 = arith.constant 0 : index
    %6 = vector.load %arg3[%c0_5, %c0_6] : memref<32x1xf32, #tpu.memory_space<vmem>>, vector<32x1xf32>
    %7 = vector.shape_cast %6 : vector<32x1xf32> to vector<32x1xf32>
    %8 = vector.broadcast %7 : vector<32x1xf32> to vector<32x256xf32>
    %9 = tpu.iota {dimensions = array<i32: 1>} : vector<1x256xi32>
    %c256_i32 = arith.constant 256 : i32
    %10 = arith.muli %arg1, %c256_i32 : i32
    %c256_i32_7 = arith.constant 256 : i32
    %11 = arith.subi %c256_i32_7, %10 : i32
    %12 = vector.broadcast %11 : i32 to vector<1x256xi32>
    %13 = arith.cmpi slt, %9, %12 : vector<1x256xi32>
    %cst = arith.constant 0.000000e+00 : f32
    %14 = vector.broadcast %cst : f32 to vector<32x1xf32>
    %15 = vector.extract_strided_slice %5 {offsets = [0, 0], sizes = [32, 1], strides = [1, 1]} : vector<32x4xf32> to vector<32x1xf32>
    %16 = vector.extract_strided_slice %4 {offsets = [0, 0], sizes = [1, 256], strides = [1, 1]} : vector<16x256xf32> to vector<1x256xf32>
    %17 = vector.broadcast %15 : vector<32x1xf32> to vector<32x256xf32>
    %18 = vector.broadcast %16 : vector<1x256xf32> to vector<32x256xf32>
    %19 = arith.mulf %17, %18 : vector<32x256xf32>
    %20 = arith.addf %8, %19 : vector<32x256xf32>
    %21 = vector.extract_strided_slice %5 {offsets = [0, 1], sizes = [32, 1], strides = [1, 1]} : vector<32x4xf32> to vector<32x1xf32>
    %22 = vector.extract_strided_slice %4 {offsets = [4, 0], sizes = [1, 256], strides = [1, 1]} : vector<16x256xf32> to vector<1x256xf32>
    %23 = vector.broadcast %21 : vector<32x1xf32> to vector<32x256xf32>
    %24 = vector.broadcast %22 : vector<1x256xf32> to vector<32x256xf32>
    %25 = arith.mulf %23, %24 : vector<32x256xf32>
    %26 = arith.addf %20, %25 : vector<32x256xf32>
    %27 = vector.extract_strided_slice %5 {offsets = [0, 2], sizes = [32, 1], strides = [1, 1]} : vector<32x4xf32> to vector<32x1xf32>
    %28 = vector.extract_strided_slice %4 {offsets = [8, 0], sizes = [1, 256], strides = [1, 1]} : vector<16x256xf32> to vector<1x256xf32>
    %29 = vector.broadcast %27 : vector<32x1xf32> to vector<32x256xf32>
    %30 = vector.broadcast %28 : vector<1x256xf32> to vector<32x256xf32>
    %31 = arith.mulf %29, %30 : vector<32x256xf32>
    %32 = arith.addf %26, %31 : vector<32x256xf32>
    %33 = vector.extract_strided_slice %5 {offsets = [0, 3], sizes = [32, 1], strides = [1, 1]} : vector<32x4xf32> to vector<32x1xf32>
    %34 = vector.extract_strided_slice %4 {offsets = [12, 0], sizes = [1, 256], strides = [1, 1]} : vector<16x256xf32> to vector<1x256xf32>
    %35 = vector.broadcast %33 : vector<32x1xf32> to vector<32x256xf32>
    %36 = vector.broadcast %34 : vector<1x256xf32> to vector<32x256xf32>
    %37 = arith.mulf %35, %36 : vector<32x256xf32>
    %38 = arith.addf %32, %37 : vector<32x256xf32>
    %cst_8 = arith.constant 0.000000e+00 : f32
    %39 = vector.broadcast %cst_8 : f32 to vector<32x256xf32>
    %40 = arith.maximumf %38, %39 : vector<32x256xf32>
    %cst_9 = arith.constant 0.000000e+00 : f32
    %41 = vector.shape_cast %13 : vector<1x256xi1> to vector<1x256xi1>
    %42 = vector.broadcast %41 : vector<1x256xi1> to vector<32x256xi1>
    %43 = vector.broadcast %cst_9 : f32 to vector<32x256xf32>
    %44 = arith.select %42, %40, %43 : vector<32x256xi1>, vector<32x256xf32>
    %cst_10 = arith.constant dense<0.000000e+00> : vector<32xf32>
    %45 = vector.multi_reduction <add>, %44, %cst_10 [1] : vector<32x256xf32> to vector<32xf32>
    %46 = vector.shape_cast %45 : vector<32xf32> to vector<32x1xf32>
    %47 = arith.addf %14, %46 : vector<32x1xf32>
    %48 = vector.extract_strided_slice %5 {offsets = [0, 0], sizes = [32, 1], strides = [1, 1]} : vector<32x4xf32> to vector<32x1xf32>
    %49 = vector.extract_strided_slice %4 {offsets = [1, 0], sizes = [1, 256], strides = [1, 1]} : vector<16x256xf32> to vector<1x256xf32>
    %50 = vector.broadcast %48 : vector<32x1xf32> to vector<32x256xf32>
    %51 = vector.broadcast %49 : vector<1x256xf32> to vector<32x256xf32>
    %52 = arith.mulf %50, %51 : vector<32x256xf32>
    %53 = arith.addf %8, %52 : vector<32x256xf32>
    %54 = vector.extract_strided_slice %5 {offsets = [0, 1], sizes = [32, 1], strides = [1, 1]} : vector<32x4xf32> to vector<32x1xf32>
    %55 = vector.extract_strided_slice %4 {offsets = [5, 0], sizes = [1, 256], strides = [1, 1]} : vector<16x256xf32> to vector<1x256xf32>
    %56 = vector.broadcast %54 : vector<32x1xf32> to vector<32x256xf32>
    %57 = vector.broadcast %55 : vector<1x256xf32> to vector<32x256xf32>
    %58 = arith.mulf %56, %57 : vector<32x256xf32>
    %59 = arith.addf %53, %58 : vector<32x256xf32>
    %60 = vector.extract_strided_slice %5 {offsets = [0, 2], sizes = [32, 1], strides = [1, 1]} : vector<32x4xf32> to vector<32x1xf32>
    %61 = vector.extract_strided_slice %4 {offsets = [9, 0], sizes = [1, 256], strides = [1, 1]} : vector<16x256xf32> to vector<1x256xf32>
    %62 = vector.broadcast %60 : vector<32x1xf32> to vector<32x256xf32>
    %63 = vector.broadcast %61 : vector<1x256xf32> to vector<32x256xf32>
    %64 = arith.mulf %62, %63 : vector<32x256xf32>
    %65 = arith.addf %59, %64 : vector<32x256xf32>
    %66 = vector.extract_strided_slice %5 {offsets = [0, 3], sizes = [32, 1], strides = [1, 1]} : vector<32x4xf32> to vector<32x1xf32>
    %67 = vector.extract_strided_slice %4 {offsets = [13, 0], sizes = [1, 256], strides = [1, 1]} : vector<16x256xf32> to vector<1x256xf32>
    %68 = vector.broadcast %66 : vector<32x1xf32> to vector<32x256xf32>
    %69 = vector.broadcast %67 : vector<1x256xf32> to vector<32x256xf32>
    %70 = arith.mulf %68, %69 : vector<32x256xf32>
    %71 = arith.addf %65, %70 : vector<32x256xf32>
    %cst_11 = arith.constant 0.000000e+00 : f32
    %72 = vector.broadcast %cst_11 : f32 to vector<32x256xf32>
    %73 = arith.maximumf %71, %72 : vector<32x256xf32>
    %cst_12 = arith.constant 0.000000e+00 : f32
    %74 = vector.shape_cast %13 : vector<1x256xi1> to vector<1x256xi1>
    %75 = vector.broadcast %74 : vector<1x256xi1> to vector<32x256xi1>
    %76 = vector.broadcast %cst_12 : f32 to vector<32x256xf32>
    %77 = arith.select %75, %73, %76 : vector<32x256xi1>, vector<32x256xf32>
    %cst_13 = arith.constant dense<0.000000e+00> : vector<32xf32>
    %78 = vector.multi_reduction <add>, %77, %cst_13 [1] : vector<32x256xf32> to vector<32xf32>
    %79 = vector.shape_cast %78 : vector<32xf32> to vector<32x1xf32>
    %80 = arith.addf %47, %79 : vector<32x1xf32>
    %81 = vector.extract_strided_slice %5 {offsets = [0, 0], sizes = [32, 1], strides = [1, 1]} : vector<32x4xf32> to vector<32x1xf32>
    %82 = vector.extract_strided_slice %4 {offsets = [2, 0], sizes = [1, 256], strides = [1, 1]} : vector<16x256xf32> to vector<1x256xf32>
    %83 = vector.broadcast %81 : vector<32x1xf32> to vector<32x256xf32>
    %84 = vector.broadcast %82 : vector<1x256xf32> to vector<32x256xf32>
    %85 = arith.mulf %83, %84 : vector<32x256xf32>
    %86 = arith.addf %8, %85 : vector<32x256xf32>
    %87 = vector.extract_strided_slice %5 {offsets = [0, 1], sizes = [32, 1], strides = [1, 1]} : vector<32x4xf32> to vector<32x1xf32>
    %88 = vector.extract_strided_slice %4 {offsets = [6, 0], sizes = [1, 256], strides = [1, 1]} : vector<16x256xf32> to vector<1x256xf32>
    %89 = vector.broadcast %87 : vector<32x1xf32> to vector<32x256xf32>
    %90 = vector.broadcast %88 : vector<1x256xf32> to vector<32x256xf32>
    %91 = arith.mulf %89, %90 : vector<32x256xf32>
    %92 = arith.addf %86, %91 : vector<32x256xf32>
    %93 = vector.extract_strided_slice %5 {offsets = [0, 2], sizes = [32, 1], strides = [1, 1]} : vector<32x4xf32> to vector<32x1xf32>
    %94 = vector.extract_strided_slice %4 {offsets = [10, 0], sizes = [1, 256], strides = [1, 1]} : vector<16x256xf32> to vector<1x256xf32>
    %95 = vector.broadcast %93 : vector<32x1xf32> to vector<32x256xf32>
    %96 = vector.broadcast %94 : vector<1x256xf32> to vector<32x256xf32>
    %97 = arith.mulf %95, %96 : vector<32x256xf32>
    %98 = arith.addf %92, %97 : vector<32x256xf32>
    %99 = vector.extract_strided_slice %5 {offsets = [0, 3], sizes = [32, 1], strides = [1, 1]} : vector<32x4xf32> to vector<32x1xf32>
    %100 = vector.extract_strided_slice %4 {offsets = [14, 0], sizes = [1, 256], strides = [1, 1]} : vector<16x256xf32> to vector<1x256xf32>
    %101 = vector.broadcast %99 : vector<32x1xf32> to vector<32x256xf32>
    %102 = vector.broadcast %100 : vector<1x256xf32> to vector<32x256xf32>
    %103 = arith.mulf %101, %102 : vector<32x256xf32>
    %104 = arith.addf %98, %103 : vector<32x256xf32>
    %cst_14 = arith.constant 0.000000e+00 : f32
    %105 = vector.broadcast %cst_14 : f32 to vector<32x256xf32>
    %106 = arith.maximumf %104, %105 : vector<32x256xf32>
    %cst_15 = arith.constant 0.000000e+00 : f32
    %107 = vector.shape_cast %13 : vector<1x256xi1> to vector<1x256xi1>
    %108 = vector.broadcast %107 : vector<1x256xi1> to vector<32x256xi1>
    %109 = vector.broadcast %cst_15 : f32 to vector<32x256xf32>
    %110 = arith.select %108, %106, %109 : vector<32x256xi1>, vector<32x256xf32>
    %cst_16 = arith.constant dense<0.000000e+00> : vector<32xf32>
    %111 = vector.multi_reduction <add>, %110, %cst_16 [1] : vector<32x256xf32> to vector<32xf32>
    %112 = vector.shape_cast %111 : vector<32xf32> to vector<32x1xf32>
    %113 = arith.addf %80, %112 : vector<32x1xf32>
    %114 = vector.extract_strided_slice %5 {offsets = [0, 0], sizes = [32, 1], strides = [1, 1]} : vector<32x4xf32> to vector<32x1xf32>
    %115 = vector.extract_strided_slice %4 {offsets = [3, 0], sizes = [1, 256], strides = [1, 1]} : vector<16x256xf32> to vector<1x256xf32>
    %116 = vector.broadcast %114 : vector<32x1xf32> to vector<32x256xf32>
    %117 = vector.broadcast %115 : vector<1x256xf32> to vector<32x256xf32>
    %118 = arith.mulf %116, %117 : vector<32x256xf32>
    %119 = arith.addf %8, %118 : vector<32x256xf32>
    %120 = vector.extract_strided_slice %5 {offsets = [0, 1], sizes = [32, 1], strides = [1, 1]} : vector<32x4xf32> to vector<32x1xf32>
    %121 = vector.extract_strided_slice %4 {offsets = [7, 0], sizes = [1, 256], strides = [1, 1]} : vector<16x256xf32> to vector<1x256xf32>
    %122 = vector.broadcast %120 : vector<32x1xf32> to vector<32x256xf32>
    %123 = vector.broadcast %121 : vector<1x256xf32> to vector<32x256xf32>
    %124 = arith.mulf %122, %123 : vector<32x256xf32>
    %125 = arith.addf %119, %124 : vector<32x256xf32>
    %126 = vector.extract_strided_slice %5 {offsets = [0, 2], sizes = [32, 1], strides = [1, 1]} : vector<32x4xf32> to vector<32x1xf32>
    %127 = vector.extract_strided_slice %4 {offsets = [11, 0], sizes = [1, 256], strides = [1, 1]} : vector<16x256xf32> to vector<1x256xf32>
    %128 = vector.broadcast %126 : vector<32x1xf32> to vector<32x256xf32>
    %129 = vector.broadcast %127 : vector<1x256xf32> to vector<32x256xf32>
    %130 = arith.mulf %128, %129 : vector<32x256xf32>
    %131 = arith.addf %125, %130 : vector<32x256xf32>
    %132 = vector.extract_strided_slice %5 {offsets = [0, 3], sizes = [32, 1], strides = [1, 1]} : vector<32x4xf32> to vector<32x1xf32>
    %133 = vector.extract_strided_slice %4 {offsets = [15, 0], sizes = [1, 256], strides = [1, 1]} : vector<16x256xf32> to vector<1x256xf32>
    %134 = vector.broadcast %132 : vector<32x1xf32> to vector<32x256xf32>
    %135 = vector.broadcast %133 : vector<1x256xf32> to vector<32x256xf32>
    %136 = arith.mulf %134, %135 : vector<32x256xf32>
    %137 = arith.addf %131, %136 : vector<32x256xf32>
    %cst_17 = arith.constant 0.000000e+00 : f32
    %138 = vector.broadcast %cst_17 : f32 to vector<32x256xf32>
    %139 = arith.maximumf %137, %138 : vector<32x256xf32>
    %cst_18 = arith.constant 0.000000e+00 : f32
    %140 = vector.shape_cast %13 : vector<1x256xi1> to vector<1x256xi1>
    %141 = vector.broadcast %140 : vector<1x256xi1> to vector<32x256xi1>
    %142 = vector.broadcast %cst_18 : f32 to vector<32x256xf32>
    %143 = arith.select %141, %139, %142 : vector<32x256xi1>, vector<32x256xf32>
    %cst_19 = arith.constant dense<0.000000e+00> : vector<32xf32>
    %144 = vector.multi_reduction <add>, %143, %cst_19 [1] : vector<32x256xf32> to vector<32xf32>
    %145 = vector.shape_cast %144 : vector<32xf32> to vector<32x1xf32>
    %146 = arith.addf %113, %145 : vector<32x1xf32>
    %c0_20 = arith.constant 0 : index
    %c0_21 = arith.constant 0 : index
    %147 = vector.load %arg6[%c0_20, %c0_21] : memref<32x1xf32, #tpu.memory_space<vmem>>, vector<32x1xf32>
    %148 = arith.addf %147, %146 : vector<32x1xf32>
    %c0_22 = arith.constant 0 : index
    %c0_23 = arith.constant 0 : index
    %149 = vector.load %arg6[%c0_22, %c0_23] : memref<32x1xf32, #tpu.memory_space<vmem>>, vector<32x1xf32>
    tpu.vector_store %arg6[%c0_22, %c0_23], %148 {strides = array<i32>} : memref<32x1xf32, #tpu.memory_space<vmem>>, vector<32x1xf32>,
    %c0_i32_24 = arith.constant 0 : i32
    %150 = arith.cmpi eq, %arg1, %c0_i32_24 : i32
    %151 = arith.extui %150 : i1 to i32
    %c0_i32_25 = arith.constant 0 : i32
    %152 = arith.cmpi ne, %151, %c0_i32_25 : i32
    scf.if %152 {
      %c0_26 = arith.constant 0 : index
      %c0_27 = arith.constant 0 : index
      %153 = vector.load %arg6[%c0_26, %c0_27] : memref<32x1xf32, #tpu.memory_space<vmem>>, vector<32x1xf32>
      %cst_28 = arith.constant 9.765625E-4 : f32
      %154 = vector.broadcast %cst_28 : f32 to vector<32x1xf32>
      %155 = arith.mulf %153, %154 : vector<32x1xf32>
      %c0_29 = arith.constant 0 : index
      %c0_30 = arith.constant 0 : index
      %c0_31 = arith.constant 0 : index
      %156 = vector.load %arg5[%c0_29, %c0_30, %c0_31] : memref<1x32x1xf32, #tpu.memory_space<vmem>>, vector<1x32x1xf32>
      %157 = vector.shape_cast %156 : vector<1x32x1xf32> to vector<32x1xf32>
      %158 = vector.shape_cast %155 : vector<32x1xf32> to vector<1x32x1xf32>
      tpu.vector_store %arg5[%c0_29, %c0_30, %c0_31], %158 {strides = array<i32>} : memref<1x32x1xf32, #tpu.memory_space<vmem>>, vector<1x32x1xf32>,
    } else {
    }
    return
  }
  func.func @transform_0(%arg0: i32, %arg1: i32) -> (i32, i32) {
    %c0_i32 = arith.constant 0 : i32
    %c0_i32_0 = arith.constant 0 : i32
    %c0_i32_1 = arith.constant 0 : i32
    return %c0_i32, %c0_i32_0 : i32, i32
  }
  func.func @transform_1(%arg0: i32, %arg1: i32) -> (i32, i32) {
    %c0_i32 = arith.constant 0 : i32
    %c0_i32_0 = arith.constant 0 : i32
    %c0_i32_1 = arith.constant 0 : i32
    return %c0_i32, %c0_i32_0 : i32, i32
  }
  func.func @transform_2(%arg0: i32, %arg1: i32) -> (i32, i32, i32) {
    %c0_i32 = arith.constant 0 : i32
    %c0_i32_0 = arith.constant 0 : i32
    return %arg0, %c0_i32, %arg1 : i32, i32, i32
  }
  func.func @transform_3(%arg0: i32, %arg1: i32) -> (i32, i32, i32) {
    %c0_i32 = arith.constant 0 : i32
    %c0_i32_0 = arith.constant 0 : i32
    %c0_i32_1 = arith.constant 0 : i32
    return %arg0, %c0_i32, %c0_i32_0 : i32, i32, i32
  }
}

</mosaic_0001>

<llo_original>
// kernel: tpu_custom_call.1
$region0: #{tpu_custom_call.1}
  #allocation0 [shape = 'u32[]', space=smem, size = 0x4, offset = 0x4, fixed_abs, tag = 'smem constant byte address 0x4 - core index']
  #allocation1 [shape = 'u32[144,128]{1,0:T(1,128)}', space=vmem, size = 0x12000, scoped, tag = 'internal scratch']
  #allocation2 [shape = 'f32[32,1]{1,0:T(8,128)}', space=vmem, size = 0x4000, scoped, tag = 'scratch operand']
  %s0 = inlined_call_operand.vmem [shape: f32[32,4], index: 0, kind: input, shape index: {}]
  %s1 = inlined_call_operand.vmem [shape: f32[32,1], index: 1, kind: input, shape index: {}]
  %s2 = inlined_call_operand.vmem [shape: f32[2,16,256], index: 2, kind: input, shape index: {}]
  %s3 = inlined_call_operand.vmem [shape: f32[2,32,1], index: 3, kind: output, shape index: {}]
  %s4 = sld [smem:[#allocation0]]
  $region53: #{tpu_custom_call.1} parent=0
    _
  %s6 = ssub.s32 1, %s4
  %s7 = scalar_select 0, %s6, %s4
  loop: start=0, step=1, limit=4
  $region2: #{tpu_custom_call.1} parent=0 // loop_pre_header
    _
  $region3: #{tpu_custom_call.1} parent=0 // loop_header
    %s9 = sphi 0, %s13
    %p10 = scmp.ge.s32.totalorder %s9, 4
    %s16 = sphi 0, %s28
    %s17 = sphi 0, %s24
    %s18 = sphi 0, %s16
    %s19 = sphi 0, %s17
    %s20 = sphi 0, %s18
    %s21 = sphi 0, %s19
    %s29 = sphi 0, %s29
    %s31 = sphi 0, %s29
    %s32 = sphi 0, %s31
    %s46 = sphi 0, %s32
    %s50 = sphi 0, %s50
    %s52 = sphi 0, %s50
    %s53 = sphi 0, %s52
    %s67 = sphi 0, %s53
    %s75 = sphi 0, %s77
    %s78 = sphi 0, %s75
    %s79 = sphi 0, %s78
    %s95 = sphi 0, %s79
    %s101 = sphi 0, %s103
    %s104 = sphi 0, %s101
    %s105 = sphi 0, %s104
    %s121 = sphi 0, %s105
  $region4: #{tpu_custom_call.1} parent=0 // loop_header_branch
    %12 = sbr.rel (%p10) target = $region8
  $region5: #{tpu_custom_call.1} parent=0 // loop_body
    %s14 = ssub.s32 %s9, 1
    %s15 = ssub.s32 %s9, 2
    %s22 = sadd.s32 1, %s17
    %p23 = scmp.ge.s32.totalorder %s22, 1
    %s24 = scalar_select %p23, 0, %s22
    %s25 = sadd.s32 1, %s16
    %s26 = scalar_select %p23, %s25, %s16
    %p27 = scmp.ge.s32.totalorder %s26, 2
    %s28 = scalar_select %p27, 0, %s26
    %s30 = sadd.s32 %s29, 1
    %p33 = scmp.eq.s32.totalorder %s9, 1
    %p34 = scmp.ne.s32.totalorder %s29, %s31
    %p35 = scmp.eq.s32.totalorder %s9, 0
    %p36 = por %p34, %p35
    %p37 = scmp.ne.s32.totalorder %s29, %s31
    %p38 = scmp.eq.s32.totalorder %s14, 1
    %p39 = por %p37, %p38
    %p40 = scmp.ne.s32.totalorder %s31, %s32
    %p41 = scmp.eq.s32.totalorder %s14, 0
    %p42 = por %p40, %p41
    %p43 = scmp.ne.s32.totalorder %s31, %s32
    %p44 = scmp.eq.s32.totalorder %s15, 1
    %p45 = por %p43, %p44
    %p47 = scmp.ne.s32.totalorder %s32, %s46
    %p48 = scmp.eq.s32.totalorder %s15, 0
    %p49 = por %p47, %p48
    %s51 = sadd.s32 %s50, 1
    %p54 = scmp.eq.s32.totalorder %s9, 1
    %p55 = scmp.ne.s32.totalorder %s50, %s52
    %p56 = scmp.eq.s32.totalorder %s9, 0
    %p57 = por %p55, %p56
    %p58 = scmp.ne.s32.totalorder %s50, %s52
    %p59 = scmp.eq.s32.totalorder %s14, 1
    %p60 = por %p58, %p59
    %p61 = scmp.ne.s32.totalorder %s52, %s53
    %p62 = scmp.eq.s32.totalorder %s14, 0
    %p63 = por %p61, %p62
    %p64 = scmp.ne.s32.totalorder %s52, %s53
    %p65 = scmp.eq.s32.totalorder %s15, 1
    %p66 = por %p64, %p65
    %p68 = scmp.ne.s32.totalorder %s53, %s67
    %p69 = scmp.eq.s32.totalorder %s15, 0
    %p70 = por %p68, %p69
    %s71 = ssub.s32 %s16, %s28
    %s72 = ssub.s32 %s17, %s24
    %s73 = sor.u32 %s71, %s72
    %p74 = scmp.eq.s32.totalorder %s73, 0
    %s76 = sadd.s32 %s75, 1
    %s77 = scalar_select %p74, %s75, %s76
    %p80 = pneg %p74
    %p81 = scmp.eq.s32.totalorder %s9, 1
    %p82 = por %p80, %p81
    %p83 = scmp.ne.s32.totalorder %s75, %s78
    %p84 = scmp.eq.s32.totalorder %s9, 0
    %p85 = por %p83, %p84
    %p86 = scmp.ne.s32.totalorder %s75, %s78
    %p87 = scmp.eq.s32.totalorder %s14, 1
    %p88 = por %p86, %p87
    %p89 = scmp.ne.s32.totalorder %s78, %s79
    %p90 = scmp.eq.s32.totalorder %s14, 0
    %p91 = por %p89, %p90
    %p92 = scmp.ne.s32.totalorder %s78, %s79
    %p93 = scmp.eq.s32.totalorder %s15, 1
    %p94 = por %p92, %p93
    %p96 = scmp.ne.s32.totalorder %s79, %s95
    %p97 = scmp.eq.s32.totalorder %s15, 0
    %p98 = por %p96, %p97
    %s99 = ssub.s32 %s16, %s28
    %p100 = scmp.eq.s32.totalorder %s99, 0
    %s102 = sadd.s32 %s101, 1
    %s103 = scalar_select %p100, %s101, %s102
    %p106 = pneg %p100
    %p107 = scmp.eq.s32.totalorder %s9, 1
    %p108 = por %p106, %p107
    %p109 = scmp.ne.s32.totalorder %s101, %s104
    %p110 = scmp.eq.s32.totalorder %s9, 0
    %p111 = por %p109, %p110
    %p112 = scmp.ne.s32.totalorder %s101, %s104
    %p113 = scmp.eq.s32.totalorder %s14, 1
    %p114 = por %p112, %p113
    %p115 = scmp.ne.s32.totalorder %s104, %s105
    %p116 = scmp.eq.s32.totalorder %s14, 0
    %p117 = por %p115, %p116
    %p118 = scmp.ne.s32.totalorder %s104, %s105
    %p119 = scmp.eq.s32.totalorder %s15, 1
    %p120 = por %p118, %p119
    %p122 = scmp.ne.s32.totalorder %s105, %s121
    %p123 = scmp.eq.s32.totalorder %s15, 0
    %p124 = por %p122, %p123
    %p125 = scmp.le.s32.totalorder 1, %s9
    %p126 = scmp.lt.s32.totalorder %s9, 3
    %p127 = pnand %p125, %p126
    %p128 = pneg %p127
    // Predicated region
    $region9: #{tpu_custom_call.1} parent=5 // pred_check
      _
    $region10: #{tpu_custom_call.1} parent=5 // pred_check_branch
      %130 = sbr.rel (%p127) target = $region12
    $region11: #{tpu_custom_call.1} parent=5 // pred_region
      %s131 = ssub.s32 %s9, 1
      // Predicated region
      $region13: #{tpu_custom_call.1} parent=11 // pred_check
        %p132 = pneg %p42
      $region14: #{tpu_custom_call.1} parent=11 // pred_check_branch
        %134 = sbr.rel (%p132) target = $region16
      $region15: #{tpu_custom_call.1} parent=11 // pred_region
        _
      $region16: #{tpu_custom_call.1} parent=11 // pred_fallthru
        _
      // Predicated region
      $region17: #{tpu_custom_call.1} parent=11 // pred_check
        %p135 = pneg %p63
      $region18: #{tpu_custom_call.1} parent=11 // pred_check_branch
        %137 = sbr.rel (%p135) target = $region20
      $region19: #{tpu_custom_call.1} parent=11 // pred_region
        _
      $region20: #{tpu_custom_call.1} parent=11 // pred_fallthru
        _
    $region12: #{tpu_custom_call.1} parent=5 // pred_fallthru
      _
    %p138 = scmp.lt.s32.totalorder %s9, 2
    // Predicated region
    $region21: #{tpu_custom_call.1} parent=5 // pred_check
      %p139 = pneg %p138
    $region22: #{tpu_custom_call.1} parent=5 // pred_check_branch
      %141 = sbr.rel (%p139) target = $region24
    $region23: #{tpu_custom_call.1} parent=5 // pred_region
      // Predicated region
      $region25: #{tpu_custom_call.1} parent=23 // pred_check
        %p142 = pneg %p85
      $region26: #{tpu_custom_call.1} parent=23 // pred_check_branch
        %144 = sbr.rel (%p142) target = $region28
      $region27: #{tpu_custom_call.1} parent=23 // pred_region
        %s145 = smul.u32 2, %s17
        %p146 = scmp.lt.s32.totalorder %s16, 1
        %s147 = scalar_select %p146, %s16, 1
        %p148 = scmp.lt.s32.totalorder %s145, 1
        %s149 = scalar_select %p148, %s145, 1
        %s150 = smul.addr %s147, 4
        %s151 = sadd.s32 %s149, %s150
        %s152 = smul.addr %s151, 8
        %s153 = scalar_lea.vmem %s2, %s152
        %s154 = smul.u32 2, %s17
      $region28: #{tpu_custom_call.1} parent=23 // pred_fallthru
        _
    $region24: #{tpu_custom_call.1} parent=5 // pred_fallthru
      _
    %p155 = scmp.le.s32.totalorder 1, %s9
    %p156 = scmp.lt.s32.totalorder %s9, 3
    %p157 = pnand %p155, %p156
    %p158 = pneg %p157
    // Predicated region
    $region29: #{tpu_custom_call.1} parent=5 // pred_check
      _
    $region30: #{tpu_custom_call.1} parent=5 // pred_check_branch
      %160 = sbr.rel (%p157) target = $region32
    $region31: #{tpu_custom_call.1} parent=5 // pred_region
      %s161 = ssub.s32 %s9, 1
      %p162 = pneg %p42
      %p163 = pneg %p39
      %p164 = pneg %p63
      %p165 = pneg %p60
      %s166 = smul.u32 2, %s19
      %p167 = scmp.lt.s32.totalorder %s18, 1
      %s168 = scalar_select %p167, %s18, 1
      %p169 = scmp.lt.s32.totalorder %s166, 1
      %s170 = scalar_select %p169, %s166, 1
      %s171 = smul.addr %s168, 4
      %s172 = sadd.s32 %s170, %s171
      %s173 = smul.addr %s172, 8
      %s174 = scalar_lea.vmem %s2, %s173
      %p175 = pneg %p91
      %p176 = pneg %p88
      %p177 = pneg %p117
      %p178 = pneg %p114
      %p179 = scmp.lt.s32.totalorder %s18, 1
      %s180 = scalar_select %p179, %s18, 1
      %s181 = smul.addr %s180, 4
      %s182 = smul.addr %s181, 8
      %s183 = scalar_lea.vmem %s3, %s182
      %s184 = smul.u32 2, %s19
      %p185 = scmp.lt.s32.totalorder %s18, 1
      %s186 = scalar_select %p185, %s18, 1
      %p187 = scmp.lt.s32.totalorder %s184, 1
      %s188 = scalar_select %p187, %s184, 1
      %s189 = smul.addr %s186, 4
      %s190 = sadd.s32 %s188, %s189
      %s191 = smul.addr %s190, 8
      %s192 = scalar_lea.vmem %s2, %s191
      %s193 = smul.u32 2, %s19
      %p194 = scmp.lt.s32.totalorder %s18, 1
      %s195 = scalar_select %p194, %s18, 1
      %s196 = smul.addr %s195, 4
      %s197 = smul.addr %s196, 8
      %s198 = scalar_lea.vmem %s3, %s197
      %p199 = scmp.eq.s32.totalorder %s19, 0
      // Predicated region
      $region33: #{tpu_custom_call.1} parent=31 // pred_check
        %p200 = pneg %p199
      $region34: #{tpu_custom_call.1} parent=31 // pred_check_branch
        %202 = sbr.rel (%p200) target = $region36
      $region35: #{tpu_custom_call.1} parent=31 // pred_region
        %vm203 = vcmask 7168
        %204 = vst.msk [vmem:[#allocation2] sm:$0xff] %vm203, 0.0
        %205 = vst.msk [vmem:[#allocation2 + $0x8] sm:$0xff] %vm203, 0.0
        %206 = vst.msk [vmem:[#allocation2 + $0x10] sm:$0xff] %vm203, 0.0
        %207 = vst.msk [vmem:[#allocation2 + $0x18] sm:$0xff] %vm203, 0.0
      $region36: #{tpu_custom_call.1} parent=31 // pred_fallthru
        _
      %v208 = vld [vmem:[%s192] sm:$0xff]
      %v209 = vld [vmem:[%s192 + $0x8] sm:$0xff]
      %v210 = vld [vmem:[%s192 + $0x10] sm:$0xff]
      %v211 = vld [vmem:[%s192 + $0x18] sm:$0xff]
      %v212 = vld [vmem:[%s0] sm:$0xff]
      %v213 = vld [vmem:[%s0 + $0x8] sm:$0xff]
      %v214 = vld [vmem:[%s0 + $0x10] sm:$0xff]
      %v215 = vld [vmem:[%s0 + $0x18] sm:$0xff]
      %v216 = vld [vmem:[%s1] sm:$0xff]
      %v217 = vld [vmem:[%s1 + $0x8] sm:$0xff]
      %v218 = vld [vmem:[%s1 + $0x10] sm:$0xff]
      %v219 = vld [vmem:[%s1 + $0x18] sm:$0xff]
      %221 = vset.pattern.permute.xlu0 0
      %222 = vperm.xlu0 %221, %v216
      %v223 = vpop.permute.xlu0 %222
      %226 = vset.pattern.permute.xlu0 0
      %227 = vperm.xlu0 %226, %v217
      %v228 = vpop.permute.xlu0 %227
      %231 = vset.pattern.permute.xlu0 0
      %232 = vperm.xlu0 %231, %v218
      %v233 = vpop.permute.xlu0 %232
      %236 = vset.pattern.permute.xlu0 0
      %237 = vperm.xlu0 %236, %v219
      %v238 = vpop.permute.xlu0 %237
      %v240 = vlaneseq
      %v241 = vand.u32 %v240, 127
      %v242 = vadd.s32 %v241, 128
      %s243 = smul.u32 %s19, 256
      %s244 = ssub.s32 256, %s243
      %v245 = vstv %s244
      %vm246 = vcmp.lt.s32.totalorder %v241, %v245
      %vm247 = vcmp.lt.s32.totalorder %v242, %v245
      %249 = vset.pattern.permute.xlu0 0
      %250 = vperm.xlu0 %249, %v212
      %v251 = vpop.permute.xlu0 %250
      %254 = vset.pattern.permute.xlu0 0
      %255 = vperm.xlu0 %254, %v213
      %v256 = vpop.permute.xlu0 %255
      %259 = vset.pattern.permute.xlu0 0
      %260 = vperm.xlu0 %259, %v214
      %v261 = vpop.permute.xlu0 %260
      %264 = vset.pattern.permute.xlu0 0
      %265 = vperm.xlu0 %264, %v215
      %v266 = vpop.permute.xlu0 %265
      %v268 = vlaneseq
      %v269 = vshrl.u32 %v268, 7
      %v270 = vsub.s32 0, %v269
      %v271 = vrot.slane %v208, %v270
      %v272 = vlaneseq
      %v273 = vshrl.u32 %v272, 7
      %v274 = vsub.s32 0, %v273
      %v275 = vrot.slane %v209, %v274
      %v276 = vmul.f32 %v251, %v271
      %v277 = vmul.f32 %v251, %v275
      %v278 = vmul.f32 %v256, %v271
      %v279 = vmul.f32 %v256, %v275
      %v280 = vmul.f32 %v261, %v271
      %v281 = vmul.f32 %v261, %v275
      %v282 = vmul.f32 %v266, %v271
      %v283 = vmul.f32 %v266, %v275
      %v284 = vadd.f32 %v223, %v276
      %v285 = vadd.f32 %v223, %v277
      %v286 = vadd.f32 %v228, %v278
      %v287 = vadd.f32 %v228, %v279
      %v288 = vadd.f32 %v233, %v280
      %v289 = vadd.f32 %v233, %v281
      %v290 = vadd.f32 %v238, %v282
      %v291 = vadd.f32 %v238, %v283
      %292 = vset.pattern.permute.xlu0 1
      %293 = vperm.xlu0 %292, %v212
      %v294 = vpop.permute.xlu0 %293
      %296 = vset.pattern.permute.xlu0 1
      %297 = vperm.xlu0 %296, %v213
      %v298 = vpop.permute.xlu0 %297
      %300 = vset.pattern.permute.xlu0 1
      %301 = vperm.xlu0 %300, %v214
      %v302 = vpop.permute.xlu0 %301
      %304 = vset.pattern.permute.xlu0 1
      %305 = vperm.xlu0 %304, %v215
      %v306 = vpop.permute.xlu0 %305
      %v308 = vlaneseq
      %v309 = vshrl.u32 %v308, 7
      %v310 = vsub.s32 4, %v309
      %v311 = vrot.slane %v208, %v310
      %v312 = vlaneseq
      %v313 = vshrl.u32 %v312, 7
      %v314 = vsub.s32 4, %v313
      %v315 = vrot.slane %v209, %v314
      %v316 = vmul.f32 %v294, %v311
      %v317 = vmul.f32 %v294, %v315
      %v318 = vmul.f32 %v298, %v311
      %v319 = vmul.f32 %v298, %v315
      %v320 = vmul.f32 %v302, %v311
      %v321 = vmul.f32 %v302, %v315
      %v322 = vmul.f32 %v306, %v311
      %v323 = vmul.f32 %v306, %v315
      %v324 = vadd.f32 %v284, %v316
      %v325 = vadd.f32 %v285, %v317
      %v326 = vadd.f32 %v286, %v318
      %v327 = vadd.f32 %v287, %v319
      %v328 = vadd.f32 %v288, %v320
      %v329 = vadd.f32 %v289, %v321
      %v330 = vadd.f32 %v290, %v322
      %v331 = vadd.f32 %v291, %v323
      %332 = vset.pattern.permute.xlu0 2
      %333 = vperm.xlu0 %332, %v212
      %v334 = vpop.permute.xlu0 %333
      %336 = vset.pattern.permute.xlu0 2
      %337 = vperm.xlu0 %336, %v213
      %v338 = vpop.permute.xlu0 %337
      %340 = vset.pattern.permute.xlu0 2
      %341 = vperm.xlu0 %340, %v214
      %v342 = vpop.permute.xlu0 %341
      %344 = vset.pattern.permute.xlu0 2
      %345 = vperm.xlu0 %344, %v215
      %v346 = vpop.permute.xlu0 %345
      %v348 = vlaneseq
      %v349 = vshrl.u32 %v348, 7
      %v350 = vsub.s32 0, %v349
      %v351 = vrot.slane %v210, %v350
      %v352 = vlaneseq
      %v353 = vshrl.u32 %v352, 7
      %v354 = vsub.s32 0, %v353
      %v355 = vrot.slane %v211, %v354
      %v356 = vmul.f32 %v334, %v351
      %v357 = vmul.f32 %v334, %v355
      %v358 = vmul.f32 %v338, %v351
      %v359 = vmul.f32 %v338, %v355
      %v360 = vmul.f32 %v342, %v351
      %v361 = vmul.f32 %v342, %v355
      %v362 = vmul.f32 %v346, %v351
      %v363 = vmul.f32 %v346, %v355
      %v364 = vadd.f32 %v324, %v356
      %v365 = vadd.f32 %v325, %v357
      %v366 = vadd.f32 %v326, %v358
      %v367 = vadd.f32 %v327, %v359
      %v368 = vadd.f32 %v328, %v360
      %v369 = vadd.f32 %v329, %v361
      %v370 = vadd.f32 %v330, %v362
      %v371 = vadd.f32 %v331, %v363
      %372 = vset.pattern.permute.xlu0 3
      %373 = vperm.xlu0 %372, %v212
      %v374 = vpop.permute.xlu0 %373
      %376 = vset.pattern.permute.xlu0 3
      %377 = vperm.xlu0 %376, %v213
      %v378 = vpop.permute.xlu0 %377
      %380 = vset.pattern.permute.xlu0 3
      %381 = vperm.xlu0 %380, %v214
      %v382 = vpop.permute.xlu0 %381
      %384 = vset.pattern.permute.xlu0 3
      %385 = vperm.xlu0 %384, %v215
      %v386 = vpop.permute.xlu0 %385
      %v388 = vlaneseq
      %v389 = vshrl.u32 %v388, 7
      %v390 = vsub.s32 4, %v389
      %v391 = vrot.slane %v210, %v390
      %v392 = vlaneseq
      %v393 = vshrl.u32 %v392, 7
      %v394 = vsub.s32 4, %v393
      %v395 = vrot.slane %v211, %v394
      %v396 = vmul.f32 %v374, %v391
      %v397 = vmul.f32 %v374, %v395
      %v398 = vmul.f32 %v378, %v391
      %v399 = vmul.f32 %v378, %v395
      %v400 = vmul.f32 %v382, %v391
      %v401 = vmul.f32 %v382, %v395
      %v402 = vmul.f32 %v386, %v391
      %v403 = vmul.f32 %v386, %v395
      %v404 = vadd.f32 %v364, %v396
      %v405 = vadd.f32 %v365, %v397
      %v406 = vadd.f32 %v366, %v398
      %v407 = vadd.f32 %v367, %v399
      %v408 = vadd.f32 %v368, %v400
      %v409 = vadd.f32 %v369, %v401
      %v410 = vadd.f32 %v370, %v402
      %v411 = vadd.f32 %v371, %v403
      %v412 = vmax.f32 %v404, 0.0
      %v413 = vmax.f32 %v405, 0.0
      %v414 = vmax.f32 %v406, 0.0
      %v415 = vmax.f32 %v407, 0.0
      %v416 = vmax.f32 %v408, 0.0
      %v417 = vmax.f32 %v409, 0.0
      %v418 = vmax.f32 %v410, 0.0
      %v419 = vmax.f32 %v411, 0.0
      %v420 = vsel %vm246, 1, 0
      %v421 = vsel %vm247, 1, 0
      %vm422 = vcmp.eq.s32.totalorder %v420, 1
      %vm423 = vcmp.eq.s32.totalorder %v421, 1
      %v424 = vsel %vm422, %v412, 0.0
      %v425 = vsel %vm423, %v413, 0.0
      %v426 = vsel %vm422, %v414, 0.0
      %v427 = vsel %vm423, %v415, 0.0
      %v428 = vsel %vm422, %v416, 0.0
      %v429 = vsel %vm423, %v417, 0.0
      %v430 = vsel %vm422, %v418, 0.0
      %v431 = vsel %vm423, %v419, 0.0
      %v432 = vadd.f32 %v424, %v425
      %433 = vadd.xlane.f32.xlu0 %v432
      %v434 = vpop.xlane.xlu0 %433
      %v435 = vadd.f32 %v426, %v427
      %436 = vadd.xlane.f32.xlu0 %v435
      %v437 = vpop.xlane.xlu0 %436
      %v438 = vadd.f32 %v428, %v429
      %439 = vadd.xlane.f32.xlu0 %v438
      %v440 = vpop.xlane.xlu0 %439
      %v441 = vadd.f32 %v430, %v431
      %442 = vadd.xlane.f32.xlu0 %v441
      %v443 = vpop.xlane.xlu0 %442
      %v444 = vadd.f32 %v434, 0.0
      %v445 = vadd.f32 %v437, 0.0
      %v446 = vadd.f32 %v440, 0.0
      %v447 = vadd.f32 %v443, 0.0
      %v448 = vlaneseq
      %v449 = vshrl.u32 %v448, 7
      %v450 = vsub.s32 1, %v449
      %v451 = vrot.slane %v208, %v450
      %v452 = vlaneseq
      %v453 = vshrl.u32 %v452, 7
      %v454 = vsub.s32 1, %v453
      %v455 = vrot.slane %v209, %v454
      %v456 = vmul.f32 %v251, %v451
      %v457 = vmul.f32 %v251, %v455
      %v458 = vmul.f32 %v256, %v451
      %v459 = vmul.f32 %v256, %v455
      %v460 = vmul.f32 %v261, %v451
      %v461 = vmul.f32 %v261, %v455
      %v462 = vmul.f32 %v266, %v451
      %v463 = vmul.f32 %v266, %v455
      %v464 = vadd.f32 %v223, %v456
      %v465 = vadd.f32 %v223, %v457
      %v466 = vadd.f32 %v228, %v458
      %v467 = vadd.f32 %v228, %v459
      %v468 = vadd.f32 %v233, %v460
      %v469 = vadd.f32 %v233, %v461
      %v470 = vadd.f32 %v238, %v462
      %v471 = vadd.f32 %v238, %v463
      %v472 = vlaneseq
      %v473 = vshrl.u32 %v472, 7
      %v474 = vsub.s32 5, %v473
      %v475 = vrot.slane %v208, %v474
      %v476 = vlaneseq
      %v477 = vshrl.u32 %v476, 7
      %v478 = vsub.s32 5, %v477
      %v479 = vrot.slane %v209, %v478
      %v480 = vmul.f32 %v294, %v475
      %v481 = vmul.f32 %v294, %v479
      %v482 = vmul.f32 %v298, %v475
      %v483 = vmul.f32 %v298, %v479
      %v484 = vmul.f32 %v302, %v475
      %v485 = vmul.f32 %v302, %v479
      %v486 = vmul.f32 %v306, %v475
      %v487 = vmul.f32 %v306, %v479
      %v488 = vadd.f32 %v464, %v480
      %v489 = vadd.f32 %v465, %v481
      %v490 = vadd.f32 %v466, %v482
      %v491 = vadd.f32 %v467, %v483
      %v492 = vadd.f32 %v468, %v484
      %v493 = vadd.f32 %v469, %v485
      %v494 = vadd.f32 %v470, %v486
      %v495 = vadd.f32 %v471, %v487
      %v496 = vlaneseq
      %v497 = vshrl.u32 %v496, 7
      %v498 = vsub.s32 1, %v497
      %v499 = vrot.slane %v210, %v498
      %v500 = vlaneseq
      %v501 = vshrl.u32 %v500, 7
      %v502 = vsub.s32 1, %v501
      %v503 = vrot.slane %v211, %v502
      %v504 = vmul.f32 %v334, %v499
      %v505 = vmul.f32 %v334, %v503
      %v506 = vmul.f32 %v338, %v499
      %v507 = vmul.f32 %v338, %v503
      %v508 = vmul.f32 %v342, %v499
      %v509 = vmul.f32 %v342, %v503
      %v510 = vmul.f32 %v346, %v499
      %v511 = vmul.f32 %v346, %v503
      %v512 = vadd.f32 %v488, %v504
      %v513 = vadd.f32 %v489, %v505
      %v514 = vadd.f32 %v490, %v506
      %v515 = vadd.f32 %v491, %v507
      %v516 = vadd.f32 %v492, %v508
      %v517 = vadd.f32 %v493, %v509
      %v518 = vadd.f32 %v494, %v510
      %v519 = vadd.f32 %v495, %v511
      %v520 = vlaneseq
      %v521 = vshrl.u32 %v520, 7
      %v522 = vsub.s32 5, %v521
      %v523 = vrot.slane %v210, %v522
      %v524 = vlaneseq
      %v525 = vshrl.u32 %v524, 7
      %v526 = vsub.s32 5, %v525
      %v527 = vrot.slane %v211, %v526
      %v528 = vmul.f32 %v374, %v523
      %v529 = vmul.f32 %v374, %v527
      %v530 = vmul.f32 %v378, %v523
      %v531 = vmul.f32 %v378, %v527
      %v532 = vmul.f32 %v382, %v523
      %v533 = vmul.f32 %v382, %v527
      %v534 = vmul.f32 %v386, %v523
      %v535 = vmul.f32 %v386, %v527
      %v536 = vadd.f32 %v512, %v528
      %v537 = vadd.f32 %v513, %v529
      %v538 = vadd.f32 %v514, %v530
      %v539 = vadd.f32 %v515, %v531
      %v540 = vadd.f32 %v516, %v532
      %v541 = vadd.f32 %v517, %v533
      %v542 = vadd.f32 %v518, %v534
      %v543 = vadd.f32 %v519, %v535
      %v544 = vmax.f32 %v536, 0.0
      %v545 = vmax.f32 %v537, 0.0
      %v546 = vmax.f32 %v538, 0.0
      %v547 = vmax.f32 %v539, 0.0
      %v548 = vmax.f32 %v540, 0.0
      %v549 = vmax.f32 %v541, 0.0
      %v550 = vmax.f32 %v542, 0.0
      %v551 = vmax.f32 %v543, 0.0
      %v552 = vsel %vm422, %v544, 0.0
      %v553 = vsel %vm423, %v545, 0.0
      %v554 = vsel %vm422, %v546, 0.0
      %v555 = vsel %vm423, %v547, 0.0
      %v556 = vsel %vm422, %v548, 0.0
      %v557 = vsel %vm423, %v549, 0.0
      %v558 = vsel %vm422, %v550, 0.0
      %v559 = vsel %vm423, %v551, 0.0
      %v560 = vadd.f32 %v552, %v553
      %561 = vadd.xlane.f32.xlu0 %v560
      %v562 = vpop.xlane.xlu0 %561
      %v563 = vadd.f32 %v554, %v555
      %564 = vadd.xlane.f32.xlu0 %v563
      %v565 = vpop.xlane.xlu0 %564
      %v566 = vadd.f32 %v556, %v557
      %567 = vadd.xlane.f32.xlu0 %v566
      %v568 = vpop.xlane.xlu0 %567
      %v569 = vadd.f32 %v558, %v559
      %570 = vadd.xlane.f32.xlu0 %v569
      %v571 = vpop.xlane.xlu0 %570
      %v572 = vadd.f32 %v444, %v562
      %v573 = vadd.f32 %v445, %v565
      %v574 = vadd.f32 %v446, %v568
      %v575 = vadd.f32 %v447, %v571
      %v576 = vlaneseq
      %v577 = vshrl.u32 %v576, 7
      %v578 = vsub.s32 2, %v577
      %v579 = vrot.slane %v208, %v578
      %v580 = vlaneseq
      %v581 = vshrl.u32 %v580, 7
      %v582 = vsub.s32 2, %v581
      %v583 = vrot.slane %v209, %v582
      %v584 = vmul.f32 %v251, %v579
      %v585 = vmul.f32 %v251, %v583
      %v586 = vmul.f32 %v256, %v579
      %v587 = vmul.f32 %v256, %v583
      %v588 = vmul.f32 %v261, %v579
      %v589 = vmul.f32 %v261, %v583
      %v590 = vmul.f32 %v266, %v579
      %v591 = vmul.f32 %v266, %v583
      %v592 = vadd.f32 %v223, %v584
      %v593 = vadd.f32 %v223, %v585
      %v594 = vadd.f32 %v228, %v586
      %v595 = vadd.f32 %v228, %v587
      %v596 = vadd.f32 %v233, %v588
      %v597 = vadd.f32 %v233, %v589
      %v598 = vadd.f32 %v238, %v590
      %v599 = vadd.f32 %v238, %v591
      %v600 = vlaneseq
      %v601 = vshrl.u32 %v600, 7
      %v602 = vsub.s32 6, %v601
      %v603 = vrot.slane %v208, %v602
      %v604 = vlaneseq
      %v605 = vshrl.u32 %v604, 7
      %v606 = vsub.s32 6, %v605
      %v607 = vrot.slane %v209, %v606
      %v608 = vmul.f32 %v294, %v603
      %v609 = vmul.f32 %v294, %v607
      %v610 = vmul.f32 %v298, %v603
      %v611 = vmul.f32 %v298, %v607
      %v612 = vmul.f32 %v302, %v603
      %v613 = vmul.f32 %v302, %v607
      %v614 = vmul.f32 %v306, %v603
      %v615 = vmul.f32 %v306, %v607
      %v616 = vadd.f32 %v592, %v608
      %v617 = vadd.f32 %v593, %v609
      %v618 = vadd.f32 %v594, %v610
      %v619 = vadd.f32 %v595, %v611
      %v620 = vadd.f32 %v596, %v612
      %v621 = vadd.f32 %v597, %v613
      %v622 = vadd.f32 %v598, %v614
      %v623 = vadd.f32 %v599, %v615
      %v624 = vlaneseq
      %v625 = vshrl.u32 %v624, 7
      %v626 = vsub.s32 2, %v625
      %v627 = vrot.slane %v210, %v626
      %v628 = vlaneseq
      %v629 = vshrl.u32 %v628, 7
      %v630 = vsub.s32 2, %v629
      %v631 = vrot.slane %v211, %v630
      %v632 = vmul.f32 %v334, %v627
      %v633 = vmul.f32 %v334, %v631
      %v634 = vmul.f32 %v338, %v627
      %v635 = vmul.f32 %v338, %v631
      %v636 = vmul.f32 %v342, %v627
      %v637 = vmul.f32 %v342, %v631
      %v638 = vmul.f32 %v346, %v627
      %v639 = vmul.f32 %v346, %v631
      %v640 = vadd.f32 %v616, %v632
      %v641 = vadd.f32 %v617, %v633
      %v642 = vadd.f32 %v618, %v634
      %v643 = vadd.f32 %v619, %v635
      %v644 = vadd.f32 %v620, %v636
      %v645 = vadd.f32 %v621, %v637
      %v646 = vadd.f32 %v622, %v638
      %v647 = vadd.f32 %v623, %v639
      %v648 = vlaneseq
      %v649 = vshrl.u32 %v648, 7
      %v650 = vsub.s32 6, %v649
      %v651 = vrot.slane %v210, %v650
      %v652 = vlaneseq
      %v653 = vshrl.u32 %v652, 7
      %v654 = vsub.s32 6, %v653
      %v655 = vrot.slane %v211, %v654
      %v656 = vmul.f32 %v374, %v651
      %v657 = vmul.f32 %v374, %v655
      %v658 = vmul.f32 %v378, %v651
      %v659 = vmul.f32 %v378, %v655
      %v660 = vmul.f32 %v382, %v651
      %v661 = vmul.f32 %v382, %v655
      %v662 = vmul.f32 %v386, %v651
      %v663 = vmul.f32 %v386, %v655
      %v664 = vadd.f32 %v640, %v656
      %v665 = vadd.f32 %v641, %v657
      %v666 = vadd.f32 %v642, %v658
      %v667 = vadd.f32 %v643, %v659
      %v668 = vadd.f32 %v644, %v660
      %v669 = vadd.f32 %v645, %v661
      %v670 = vadd.f32 %v646, %v662
      %v671 = vadd.f32 %v647, %v663
      %v672 = vmax.f32 %v664, 0.0
      %v673 = vmax.f32 %v665, 0.0
      %v674 = vmax.f32 %v666, 0.0
      %v675 = vmax.f32 %v667, 0.0
      %v676 = vmax.f32 %v668, 0.0
      %v677 = vmax.f32 %v669, 0.0
      %v678 = vmax.f32 %v670, 0.0
      %v679 = vmax.f32 %v671, 0.0
      %v680 = vsel %vm422, %v672, 0.0
      %v681 = vsel %vm423, %v673, 0.0
      %v682 = vsel %vm422, %v674, 0.0
      %v683 = vsel %vm423, %v675, 0.0
      %v684 = vsel %vm422, %v676, 0.0
      %v685 = vsel %vm423, %v677, 0.0
      %v686 = vsel %vm422, %v678, 0.0
      %v687 = vsel %vm423, %v679, 0.0
      %v688 = vadd.f32 %v680, %v681
      %689 = vadd.xlane.f32.xlu0 %v688
      %v690 = vpop.xlane.xlu0 %689
      %v691 = vadd.f32 %v682, %v683
      %692 = vadd.xlane.f32.xlu0 %v691
      %v693 = vpop.xlane.xlu0 %692
      %v694 = vadd.f32 %v684, %v685
      %695 = vadd.xlane.f32.xlu0 %v694
      %v696 = vpop.xlane.xlu0 %695
      %v697 = vadd.f32 %v686, %v687
      %698 = vadd.xlane.f32.xlu0 %v697
      %v699 = vpop.xlane.xlu0 %698
      %v700 = vadd.f32 %v572, %v690
      %v701 = vadd.f32 %v573, %v693
      %v702 = vadd.f32 %v574, %v696
      %v703 = vadd.f32 %v575, %v699
      %v704 = vlaneseq
      %v705 = vshrl.u32 %v704, 7
      %v706 = vsub.s32 3, %v705
      %v707 = vrot.slane %v208, %v706
      %v708 = vlaneseq
      %v709 = vshrl.u32 %v708, 7
      %v710 = vsub.s32 3, %v709
      %v711 = vrot.slane %v209, %v710
      %v712 = vmul.f32 %v251, %v707
      %v713 = vmul.f32 %v251, %v711
      %v714 = vmul.f32 %v256, %v707
      %v715 = vmul.f32 %v256, %v711
      %v716 = vmul.f32 %v261, %v707
      %v717 = vmul.f32 %v261, %v711
      %v718 = vmul.f32 %v266, %v707
      %v719 = vmul.f32 %v266, %v711
      %v720 = vadd.f32 %v223, %v712
      %v721 = vadd.f32 %v223, %v713
      %v722 = vadd.f32 %v228, %v714
      %v723 = vadd.f32 %v228, %v715
      %v724 = vadd.f32 %v233, %v716
      %v725 = vadd.f32 %v233, %v717
      %v726 = vadd.f32 %v238, %v718
      %v727 = vadd.f32 %v238, %v719
      %v728 = vlaneseq
      %v729 = vshrl.u32 %v728, 7
      %v730 = vsub.s32 7, %v729
      %v731 = vrot.slane %v208, %v730
      %v732 = vlaneseq
      %v733 = vshrl.u32 %v732, 7
      %v734 = vsub.s32 7, %v733
      %v735 = vrot.slane %v209, %v734
      %v736 = vmul.f32 %v294, %v731
      %v737 = vmul.f32 %v294, %v735
      %v738 = vmul.f32 %v298, %v731
      %v739 = vmul.f32 %v298, %v735
      %v740 = vmul.f32 %v302, %v731
      %v741 = vmul.f32 %v302, %v735
      %v742 = vmul.f32 %v306, %v731
      %v743 = vmul.f32 %v306, %v735
      %v744 = vadd.f32 %v720, %v736
      %v745 = vadd.f32 %v721, %v737
      %v746 = vadd.f32 %v722, %v738
      %v747 = vadd.f32 %v723, %v739
      %v748 = vadd.f32 %v724, %v740
      %v749 = vadd.f32 %v725, %v741
      %v750 = vadd.f32 %v726, %v742
      %v751 = vadd.f32 %v727, %v743
      %v752 = vlaneseq
      %v753 = vshrl.u32 %v752, 7
      %v754 = vsub.s32 3, %v753
      %v755 = vrot.slane %v210, %v754
      %v756 = vlaneseq
      %v757 = vshrl.u32 %v756, 7
      %v758 = vsub.s32 3, %v757
      %v759 = vrot.slane %v211, %v758
      %v760 = vmul.f32 %v334, %v755
      %v761 = vmul.f32 %v334, %v759
      %v762 = vmul.f32 %v338, %v755
      %v763 = vmul.f32 %v338, %v759
      %v764 = vmul.f32 %v342, %v755
      %v765 = vmul.f32 %v342, %v759
      %v766 = vmul.f32 %v346, %v755
      %v767 = vmul.f32 %v346, %v759
      %v768 = vadd.f32 %v744, %v760
      %v769 = vadd.f32 %v745, %v761
      %v770 = vadd.f32 %v746, %v762
      %v771 = vadd.f32 %v747, %v763
      %v772 = vadd.f32 %v748, %v764
      %v773 = vadd.f32 %v749, %v765
      %v774 = vadd.f32 %v750, %v766
      %v775 = vadd.f32 %v751, %v767
      %v776 = vlaneseq
      %v777 = vshrl.u32 %v776, 7
      %v778 = vsub.s32 7, %v777
      %v779 = vrot.slane %v210, %v778
      %v780 = vlaneseq
      %v781 = vshrl.u32 %v780, 7
      %v782 = vsub.s32 7, %v781
      %v783 = vrot.slane %v211, %v782
      %v784 = vmul.f32 %v374, %v779
      %v785 = vmul.f32 %v374, %v783
      %v786 = vmul.f32 %v378, %v779
      %v787 = vmul.f32 %v378, %v783
      %v788 = vmul.f32 %v382, %v779
      %v789 = vmul.f32 %v382, %v783
      %v790 = vmul.f32 %v386, %v779
      %v791 = vmul.f32 %v386, %v783
      %v792 = vadd.f32 %v768, %v784
      %v793 = vadd.f32 %v769, %v785
      %v794 = vadd.f32 %v770, %v786
      %v795 = vadd.f32 %v771, %v787
      %v796 = vadd.f32 %v772, %v788
      %v797 = vadd.f32 %v773, %v789
      %v798 = vadd.f32 %v774, %v790
      %v799 = vadd.f32 %v775, %v791
      %v800 = vmax.f32 %v792, 0.0
      %v801 = vmax.f32 %v793, 0.0
      %v802 = vmax.f32 %v794, 0.0
      %v803 = vmax.f32 %v795, 0.0
      %v804 = vmax.f32 %v796, 0.0
      %v805 = vmax.f32 %v797, 0.0
      %v806 = vmax.f32 %v798, 0.0
      %v807 = vmax.f32 %v799, 0.0
      %v808 = vsel %vm422, %v800, 0.0
      %v809 = vsel %vm423, %v801, 0.0
      %v810 = vsel %vm422, %v802, 0.0
      %v811 = vsel %vm423, %v803, 0.0
      %v812 = vsel %vm422, %v804, 0.0
      %v813 = vsel %vm423, %v805, 0.0
      %v814 = vsel %vm422, %v806, 0.0
      %v815 = vsel %vm423, %v807, 0.0
      %v816 = vadd.f32 %v808, %v809
      %817 = vadd.xlane.f32.xlu0 %v816
      %v818 = vpop.xlane.xlu0 %817
      %v819 = vadd.f32 %v810, %v811
      %820 = vadd.xlane.f32.xlu0 %v819
      %v821 = vpop.xlane.xlu0 %820
      %v822 = vadd.f32 %v812, %v813
      %823 = vadd.xlane.f32.xlu0 %v822
      %v824 = vpop.xlane.xlu0 %823
      %v825 = vadd.f32 %v814, %v815
      %826 = vadd.xlane.f32.xlu0 %v825
      %v827 = vpop.xlane.xlu0 %826
      %v828 = vadd.f32 %v700, %v818
      %v829 = vadd.f32 %v701, %v821
      %v830 = vadd.f32 %v702, %v824
      %v831 = vadd.f32 %v703, %v827
      %v832 = vld [vmem:[#allocation2] sm:$0xff]
      %v833 = vld [vmem:[#allocation2 + $0x8] sm:$0xff]
      %v834 = vld [vmem:[#allocation2 + $0x10] sm:$0xff]
      %v835 = vld [vmem:[#allocation2 + $0x18] sm:$0xff]
      %v836 = vadd.f32 %v832, %v828
      %v837 = vadd.f32 %v833, %v829
      %v838 = vadd.f32 %v834, %v830
      %v839 = vadd.f32 %v835, %v831
      %vm840 = vcmask 7168
      %841 = vst.msk [vmem:[#allocation2] sm:$0xff] %vm840, %v836
      %842 = vst.msk [vmem:[#allocation2 + $0x8] sm:$0xff] %vm840, %v837
      %843 = vst.msk [vmem:[#allocation2 + $0x10] sm:$0xff] %vm840, %v838
      %844 = vst.msk [vmem:[#allocation2 + $0x18] sm:$0xff] %vm840, %v839
      // Predicated region
      $region37: #{tpu_custom_call.1} parent=31 // pred_check
        %p845 = pneg %p199
      $region38: #{tpu_custom_call.1} parent=31 // pred_check_branch
        %847 = sbr.rel (%p845) target = $region40
      $region39: #{tpu_custom_call.1} parent=31 // pred_region
        %v848 = vld [vmem:[#allocation2] sm:$0xff]
        %v849 = vld [vmem:[#allocation2 + $0x8] sm:$0xff]
        %v850 = vld [vmem:[#allocation2 + $0x10] sm:$0xff]
        %v851 = vld [vmem:[#allocation2 + $0x18] sm:$0xff]
        %v852 = vmul.f32 %v848, 0.0009765625
        %v853 = vmul.f32 %v849, 0.0009765625
        %v854 = vmul.f32 %v850, 0.0009765625
        %v855 = vmul.f32 %v851, 0.0009765625
        %856 = vst.msk [vmem:[%s198] sm:$0xff] %vm840, %v852
        %857 = vst.msk [vmem:[%s198 + $0x8] sm:$0xff] %vm840, %v853
        %858 = vst.msk [vmem:[%s198 + $0x10] sm:$0xff] %vm840, %v854
        %859 = vst.msk [vmem:[%s198 + $0x18] sm:$0xff] %vm840, %v855
      $region40: #{tpu_custom_call.1} parent=31 // pred_fallthru
        _
      %p860 = scmp.lt.s32.totalorder %s18, 1
      %s861 = scalar_select %p860, %s18, 1
      %s862 = smul.addr %s861, 4
      %s863 = smul.addr %s862, 8
      %s864 = scalar_lea.vmem %s3, %s863
      // Predicated region
      $region41: #{tpu_custom_call.1} parent=31 // pred_check
        %p865 = pneg %p114
      $region42: #{tpu_custom_call.1} parent=31 // pred_check_branch
        %867 = sbr.rel (%p865) target = $region44
      $region43: #{tpu_custom_call.1} parent=31 // pred_region
        _
      $region44: #{tpu_custom_call.1} parent=31 // pred_fallthru
        _
    $region32: #{tpu_custom_call.1} parent=5 // pred_fallthru
      _
    %p868 = scmp.le.s32.totalorder 2, %s9
    // Predicated region
    $region45: #{tpu_custom_call.1} parent=5 // pred_check
      %p869 = pneg %p868
    $region46: #{tpu_custom_call.1} parent=5 // pred_check_branch
      %871 = sbr.rel (%p869) target = $region48
    $region47: #{tpu_custom_call.1} parent=5 // pred_region
      %s872 = ssub.s32 %s9, 2
      // Predicated region
      $region49: #{tpu_custom_call.1} parent=47 // pred_check
        %p873 = pneg %p120
      $region50: #{tpu_custom_call.1} parent=47 // pred_check_branch
        %875 = sbr.rel (%p873) target = $region52
      $region51: #{tpu_custom_call.1} parent=47 // pred_region
        %p876 = scmp.lt.s32.totalorder %s20, 1
        %s877 = scalar_select %p876, %s20, 1
        %s878 = smul.addr %s877, 4
        %s879 = smul.addr %s878, 8
        %s880 = scalar_lea.vmem %s3, %s879
      $region52: #{tpu_custom_call.1} parent=47 // pred_fallthru
        _
    $region48: #{tpu_custom_call.1} parent=5 // pred_fallthru
      _
  $region6: #{tpu_custom_call.1} parent=0 // loop_footer
    %s13 = sadd.s32 1, %s9
  $region7: #{tpu_custom_call.1} parent=0 // loop_footer_branch
    %8 = sbr.rel target = $region3
  $region8: #{tpu_custom_call.1} parent=0 // loop_exit
    _

</llo_original>
